<compile_context>
chip_gen: v7x
topology: tpu7x:2x2x1
jax: 0.10.0
libtpu: 0.0.40
codegen_flags: <defaults>
</compile_context>

<pallas_src>
import numpy as np
import jax
import jax.numpy as jnp
from jax.experimental import pallas as pl
from jax.experimental.pallas import tpu as pltpu

# ----------------------------- problem constants -----------------------------
BATCH = 2
IMG = 16
HW = IMG * IMG              # 256 lanes -> lane-dense activations
IN_CH = 3
CONV_CH = 4
KSIZE = 3
POOL = 2
HALF = IMG // POOL          # 8
FC_SIZE = 32
OUT_SIZE = 10
FLAT = CONV_CH * HALF * HALF  # 256
OUT_PAD = 128               # lane-dense padded fc widths

# Shift enumeration order (must match packed conv weights): s = (dh+1)*3 + (dw+1)
SHIFTS = tuple((dh, dw) for dh in (-1, 0, 1) for dw in (-1, 0, 1))

# Conv scratch layout: 9 shifted copies at 8-row stride; row 72 stays constant 1.0
# (supplies the bias term); rows 72:128 are 1.0 x zero-weight-columns == 0 contribution.
PIECE_STRIDE = 8
BIAS_ROW = 9 * PIECE_STRIDE          # 72
SCRATCH_ROWS = 128                   # conv matmul contraction depth

# Packed parameter slab (single f32 (SLAB_ROWS, 256) operand) — row offsets.
ROW_MASK = 0                         # 9 border-validity masks (block alloc 16 rows)
ROW_L1 = 16                          # conv1 block-diag weight (8,128), bias in col 72
ROW_L2 = 24                          # conv2 block-diag weight (8,128), bias in col 72
ROW_WCAT = 32                        # fc1 weight expanded over 16x16 grid, (256,128)
ROW_FC2W = ROW_WCAT + HW             # 288: fc2 weight padded to (128,128)
ROW_CHSEL = ROW_FC2W + OUT_PAD       # 416: channel-diagonal lane-block mask (8,128)
ROW_RSEL = ROW_CHSEL + 8             # 424: per-sample row-sum selector (2,8)
ROW_FC1B = ROW_RSEL + BATCH          # 426: fc1 bias (1,128)
ROW_FC2B = ROW_FC1B + 1              # 427: fc2 bias (1,128)
SLAB_ROWS = 432                      # padded to a multiple of 8


# ----------------------------------------------------------------------------
# Single fused kernel
# ----------------------------------------------------------------------------
def fused_forward_kernel(x_ref, slab_ref, out_ref, s_ref):
    """conv1+ReLU -> conv2+ReLU -> maxpool2x2 -> fc1+ReLU -> fc2, all in VMEM.

    Activation layout: (BATCH*channels, H*W) — (sample, channel) on sublanes,
    the flattened 16x16 image on 256 lanes.
    """
    f32 = jnp.float32

    # One-time scratch fill with 1.0: row 72 supplies the conv-bias term, and every
    # row a conv layer does not overwrite stays finite (its weight column is zero).
    s_ref[...] = jnp.ones(s_ref.shape, f32)

    maskblk = slab_ref[0:16, :]      # rows 0:9 are the precomputed border masks

    def conv3x3_relu(a, nrows, l_row):
        # 3x3 'same' conv: 9 lane-rolled + masked copies of `a` written into the
        # scratch at 8-row stride, then ONE block-diagonal MXU matmul (bias folded
        # into column 72 against the constant-ones scratch row).
        for s, (dh, dw) in enumerate(SHIFTS):
            off = dh * IMG + dw
            if off == 0:
                piece = a                                        # centre tap, mask == 1
            else:
                piece = pltpu.roll(a, (-off) % HW, 1) * maskblk[s:s + 1, :]
            s_ref[PIECE_STRIDE * s:PIECE_STRIDE * s + nrows, :] = piece
        l = slab_ref[l_row:l_row + BATCH * CONV_CH, 0:SCRATCH_ROWS]
        y = jnp.dot(l, s_ref[...], preferred_element_type=f32)   # (8, 256)
        return jnp.maximum(y, 0.0)

    a1 = conv3x3_relu(x_ref[...], BATCH * IN_CH, ROW_L1)   # Conv1 -> ReLU (-> ReLU, idempotent)
    a2 = conv3x3_relu(a1, BATCH * CONV_CH, ROW_L2)         # Conv2 -> ReLU

    # MaxPool2d(2,2): VPU maxima of lane-rolled copies; the 2x2-window max lands on
    # even-(h,w) lanes.  Wrapped / odd-(h,w) lanes are never consumed because the
    # expanded fc1 weight (wcat) is zero there.  ReLU-after-pool is identity (a2>=0).
    m1 = jnp.maximum(a2, pltpu.roll(a2, HW - 1, 1))         # max(x[p], x[p+1])
    m2 = jnp.maximum(m1, pltpu.roll(m1, HW - IMG, 1))       # ... and rows p+16, p+17

    # Flatten + Linear(256->32): pooling/flatten folded into wcat; ONE wide MXU matmul,
    # channel-diagonal lane-block mask, per-sample row-sum, lane-roll block fold.
    wcat = slab_ref[ROW_WCAT:ROW_WCAT + HW, 0:OUT_PAD]
    t = jnp.dot(m2, wcat, preferred_element_type=f32)                     # (8, 128)
    t = t * slab_ref[ROW_CHSEL:ROW_CHSEL + BATCH * CONV_CH, 0:OUT_PAD]    # keep c'==c blocks
    rsel = slab_ref[ROW_RSEL:ROW_RSEL + BATCH, 0:BATCH * CONV_CH]
    u = jnp.dot(rsel, t, preferred_element_type=f32)                      # (2, 128)
    u = u + pltpu.roll(u, 64, 1)
    u = u + pltpu.roll(u, 96, 1)          # lanes 0:32 now hold the 4-channel-block sum
    h1 = jnp.maximum(u + slab_ref[ROW_FC1B:ROW_FC1B + 1, 0:OUT_PAD], 0.0)
    # Dropout(p=0.0) == identity at inference.

    # Linear(32->10), padded to 128 lanes: rows 32:128 of fc2w are zero, so the junk
    # lanes of h1 are killed; lane-dense (2,128) store, sliced to 10 in the wrapper.
    fc2w = slab_ref[ROW_FC2W:ROW_FC2W + OUT_PAD, 0:OUT_PAD]
    out_ref[...] = (jnp.dot(h1, fc2w, preferred_element_type=f32)
                    + slab_ref[ROW_FC2B:ROW_FC2B + 1, 0:OUT_PAD])


# ----------------------------------------------------------------------------
# Wrappers
# ----------------------------------------------------------------------------
def _pallas_forward(x_l, slab):
    return pl.pallas_call(
        fused_forward_kernel,
        out_shape=jax.ShapeDtypeStruct((BATCH, OUT_PAD), jnp.float32),
        in_specs=[pl.BlockSpec(memory_space=pltpu.MemorySpace.VMEM),
                  pl.BlockSpec(memory_space=pltpu.MemorySpace.VMEM)],
        out_specs=pl.BlockSpec(memory_space=pltpu.MemorySpace.VMEM),
        scratch_shapes=[pltpu.VMEM((SCRATCH_ROWS, HW), jnp.float32)],
        cost_estimate=pl.CostEstimate(flops=1_800_000, transcendentals=0,
                                      bytes_accessed=456_000),
    )(x_l, slab)


@jax.jit
def forward(x, slab):
    # NCHW -> (N*C, H*W): contiguous reshape (free bitcast); no per-call padding.
    x_l = x.reshape(BATCH * IN_CH, HW)
    return _pallas_forward(x_l, slab)[:, :OUT_SIZE]


# ----------------------------------------------------------------------------
# One-time host-side repack of PyTorch-layout weights into the kernel slab
# ----------------------------------------------------------------------------
def prepare_params(p):
    w1 = np.asarray(p["conv1_w"])            # (4,3,3,3)  OIHW
    b1 = np.asarray(p["conv1_b"])            # (4,)
    w2 = np.asarray(p["conv2_w"])            # (4,4,3,3)
    b2 = np.asarray(p["conv2_b"])
    fc1_w = np.asarray(p["fc1_w"])           # (256,32)  (in,out)
    fc1_b = np.asarray(p["fc1_b"]).reshape(-1)
    fc2_w = np.asarray(p["fc2_w"])           # (32,10)   (in,out)
    fc2_b = np.asarray(p["fc2_b"]).reshape(-1)

    slab = np.zeros((SLAB_ROWS, HW), np.float32)

    # --- 9 border-validity masks for the shifted conv taps ---
    lane = np.arange(HW)
    hh, ww = lane // IMG, lane % IMG
    for s, (dh, dw) in enumerate(SHIFTS):
        ok = (hh + dh >= 0) & (hh + dh < IMG) & (ww + dw >= 0) & (ww + dw < IMG)
        slab[ROW_MASK + s, :] = ok.astype(np.float32)

    # --- conv block-diagonal weights (bias folded into column BIAS_ROW) ---
    def pack_conv(w, b, cin):
        blk = np.zeros((BATCH * CONV_CH, OUT_PAD), np.float32)
        for s, (dh, dw) in enumerate(SHIFTS):
            for n in range(BATCH):
                for co in range(CONV_CH):
                    row = n * CONV_CH + co
                    for ci in range(cin):
                        blk[row, PIECE_STRIDE * s + n * cin + ci] = w[co, ci, dh + 1, dw + 1]
                    blk[row, BIAS_ROW] = b[co]
        return blk

    slab[ROW_L1:ROW_L1 + BATCH * CONV_CH, :OUT_PAD] = pack_conv(w1, b1, IN_CH)
    slab[ROW_L2:ROW_L2 + BATCH * CONV_CH, :OUT_PAD] = pack_conv(w2, b2, CONV_CH)

    # --- fc1 weight expanded over the full 16x16 grid (pooling + flatten folded in),
    #     channel blocks concatenated along the output lanes: col = c*32 + j ---
    w1r = fc1_w.reshape(CONV_CH, HALF, HALF, FC_SIZE)
    for c in range(CONV_CH):
        for h8 in range(HALF):
            for w8 in range(HALF):
                slab[ROW_WCAT + (POOL * h8) * IMG + POOL * w8,
                     c * FC_SIZE:(c + 1) * FC_SIZE] = w1r[c, h8, w8, :]

    # --- fc2 weight padded to (128,128): rows 32:128 / cols 10:128 stay zero ---
    slab[ROW_FC2W:ROW_FC2W + FC_SIZE, :OUT_SIZE] = fc2_w

    # --- channel-diagonal lane-block mask and per-sample row-sum selector ---
    rows = np.arange(BATCH * CONV_CH)[:, None]
    lanes = np.arange(OUT_PAD)[None, :]
    slab[ROW_CHSEL:ROW_CHSEL + BATCH * CONV_CH, :OUT_PAD] = (
        (lanes // FC_SIZE) == (rows % CONV_CH)).astype(np.float32)
    slab[ROW_RSEL:ROW_RSEL + BATCH, :BATCH * CONV_CH] = (
        (np.arange(BATCH * CONV_CH)[None, :] // CONV_CH)
        == np.arange(BATCH)[:, None]).astype(np.float32)

    # --- biases ---
    slab[ROW_FC1B, :FC_SIZE] = fc1_b
    slab[ROW_FC2B, :OUT_SIZE] = fc2_b

    return jnp.asarray(slab)


# ----------------------------------------------------------------------------
# Parameter init (matches the module's xavier_normal_(gain=relu) / zeros_ bias)
# ----------------------------------------------------------------------------
def init_params(key):
    gain = float(np.sqrt(2.0))  # nn.init.calculate_gain('relu')
    k1, k2, k3, k4 = jax.random.split(key, 4)

    def xavier(k, shape, fan_in, fan_out):
        std = gain * float(np.sqrt(2.0 / (fan_in + fan_out)))
        return std * jax.random.normal(k, shape, dtype=jnp.float32)

    return {
        "conv1_w": xavier(k1, (CONV_CH, IN_CH, KSIZE, KSIZE),
                          IN_CH * KSIZE * KSIZE, CONV_CH * KSIZE * KSIZE),
        "conv1_b": jnp.zeros((CONV_CH,), jnp.float32),
        "conv2_w": xavier(k2, (CONV_CH, CONV_CH, KSIZE, KSIZE),
                          CONV_CH * KSIZE * KSIZE, CONV_CH * KSIZE * KSIZE),
        "conv2_b": jnp.zeros((CONV_CH,), jnp.float32),
        "fc1_w": xavier(k3, (FLAT, FC_SIZE), FLAT, FC_SIZE),   # stored (in, out)
        "fc1_b": jnp.zeros((1, FC_SIZE), jnp.float32),
        "fc2_w": xavier(k4, (FC_SIZE, OUT_SIZE), FC_SIZE, OUT_SIZE),
        "fc2_b": jnp.zeros((1, OUT_SIZE), jnp.float32),
    }


# ----------------------------------------------------------------------------
# Pure-JAX reference (PyTorch semantics) for validation
# ----------------------------------------------------------------------------
def ref_forward(x, p):
    dn = ("NCHW", "OIHW", "NCHW")
    hp = jax.lax.Precision.HIGHEST
    y = jax.lax.conv_general_dilated(x, p["conv1_w"], (1, 1), "SAME",
                                     dimension_numbers=dn, precision=hp)
    y = jnp.maximum(y + p["conv1_b"][None, :, None, None], 0.0)
    y = jax.lax.conv_general_dilated(y, p["conv2_w"], (1, 1), "SAME",
                                     dimension_numbers=dn, precision=hp)
    y = jnp.maximum(y + p["conv2_b"][None, :, None, None], 0.0)
    y = jax.lax.reduce_window(y, -jnp.inf, jax.lax.max,
                              (1, 1, 2, 2), (1, 1, 2, 2), "VALID")
    y = jnp.maximum(y, 0.0)
    y = y.reshape(y.shape[0], -1)
    y = jnp.maximum(jnp.dot(y, p["fc1_w"], precision=hp) + p["fc1_b"][0], 0.0)
    return jnp.dot(y, p["fc2_w"], precision=hp) + p["fc2_b"][0]


if __name__ == "__main__":
    key = jax.random.PRNGKey(0)
    kx, kp = jax.random.split(key)
    x = jax.random.normal(kx, (BATCH, IN_CH, IMG, IMG), dtype=jnp.float32)
    params = init_params(kp)
    slab = prepare_params(params)   # one-time weight repacking, outside forward

    out = jax.block_until_ready(forward(x, slab))
    assert out.shape == (BATCH, OUT_SIZE)

    ref = ref_forward(x, params)
    np.testing.assert_allclose(np.asarray(out), np.asarray(ref), rtol=2e-2, atol=2e-2)
    print("KERNEL_OK")
</pallas_src>

<mosaic_0001>
module attributes {stable_mosaic.version = 11 : i64} {
  func.func @fused_forward_kernel(%arg0: memref<6x256xf32, #tpu.memory_space<vmem>>, %arg1: memref<432x256xf32, #tpu.memory_space<vmem>>, %arg2: memref<2x128xf32, #tpu.memory_space<vmem>>, %arg3: memref<128x256xf32, #tpu.memory_space<vmem>>) attributes {dimension_semantics = [], scalar_prefetch = 0 : i64, scratch_operands = 1 : i64, tpu.core_type = #tpu.core_type<tc>} {
    %cst = arith.constant 1.000000e+00 : f32
    %0 = vector.broadcast %cst : f32 to vector<128x256xf32>
    %c0 = arith.constant 0 : index
    %c0_0 = arith.constant 0 : index
    %1 = vector.load %arg3[%c0, %c0_0] : memref<128x256xf32, #tpu.memory_space<vmem>>, vector<128x256xf32>
    tpu.vector_store %arg3[%c0, %c0_0], %0 {strides = array<i32>} : memref<128x256xf32, #tpu.memory_space<vmem>>, vector<128x256xf32>,
    %c0_1 = arith.constant 0 : index
    %c0_2 = arith.constant 0 : index
    %2 = vector.load %arg1[%c0_1, %c0_2] : memref<432x256xf32, #tpu.memory_space<vmem>>, vector<16x256xf32>
    %c0_3 = arith.constant 0 : index
    %c0_4 = arith.constant 0 : index
    %3 = vector.load %arg0[%c0_3, %c0_4] : memref<6x256xf32, #tpu.memory_space<vmem>>, vector<6x256xf32>
    %c17_i32 = arith.constant 17 : i32
    %4 = tpu.dynamic_rotate %3 by %c17_i32 dim 1 : vector<6x256xf32>, i32 -> vector<6x256xf32>
    %5 = vector.extract_strided_slice %2 {offsets = [0, 0], sizes = [1, 256], strides = [1, 1]} : vector<16x256xf32> to vector<1x256xf32>
    %6 = vector.broadcast %5 : vector<1x256xf32> to vector<6x256xf32>
    %7 = arith.mulf %4, %6 : vector<6x256xf32>
    %c0_5 = arith.constant 0 : index
    %c0_6 = arith.constant 0 : index
    %8 = vector.load %arg3[%c0_5, %c0_6] : memref<128x256xf32, #tpu.memory_space<vmem>>, vector<6x256xf32>
    tpu.vector_store %arg3[%c0_5, %c0_6], %7 {strides = array<i32>} : memref<128x256xf32, #tpu.memory_space<vmem>>, vector<6x256xf32>,
    %c16_i32 = arith.constant 16 : i32
    %9 = tpu.dynamic_rotate %3 by %c16_i32 dim 1 : vector<6x256xf32>, i32 -> vector<6x256xf32>
    %10 = vector.extract_strided_slice %2 {offsets = [1, 0], sizes = [1, 256], strides = [1, 1]} : vector<16x256xf32> to vector<1x256xf32>
    %11 = vector.broadcast %10 : vector<1x256xf32> to vector<6x256xf32>
    %12 = arith.mulf %9, %11 : vector<6x256xf32>
    %c8 = arith.constant 8 : index
    %c0_7 = arith.constant 0 : index
    %13 = vector.load %arg3[%c8, %c0_7] : memref<128x256xf32, #tpu.memory_space<vmem>>, vector<6x256xf32>
    tpu.vector_store %arg3[%c8, %c0_7], %12 {strides = array<i32>} : memref<128x256xf32, #tpu.memory_space<vmem>>, vector<6x256xf32>,
    %c15_i32 = arith.constant 15 : i32
    %14 = tpu.dynamic_rotate %3 by %c15_i32 dim 1 : vector<6x256xf32>, i32 -> vector<6x256xf32>
    %15 = vector.extract_strided_slice %2 {offsets = [2, 0], sizes = [1, 256], strides = [1, 1]} : vector<16x256xf32> to vector<1x256xf32>
    %16 = vector.broadcast %15 : vector<1x256xf32> to vector<6x256xf32>
    %17 = arith.mulf %14, %16 : vector<6x256xf32>
    %c16 = arith.constant 16 : index
    %c0_8 = arith.constant 0 : index
    %18 = vector.load %arg3[%c16, %c0_8] : memref<128x256xf32, #tpu.memory_space<vmem>>, vector<6x256xf32>
    tpu.vector_store %arg3[%c16, %c0_8], %17 {strides = array<i32>} : memref<128x256xf32, #tpu.memory_space<vmem>>, vector<6x256xf32>,
    %c1_i32 = arith.constant 1 : i32
    %19 = tpu.dynamic_rotate %3 by %c1_i32 dim 1 : vector<6x256xf32>, i32 -> vector<6x256xf32>
    %20 = vector.extract_strided_slice %2 {offsets = [3, 0], sizes = [1, 256], strides = [1, 1]} : vector<16x256xf32> to vector<1x256xf32>
    %21 = vector.broadcast %20 : vector<1x256xf32> to vector<6x256xf32>
    %22 = arith.mulf %19, %21 : vector<6x256xf32>
    %c24 = arith.constant 24 : index
    %c0_9 = arith.constant 0 : index
    %23 = vector.load %arg3[%c24, %c0_9] : memref<128x256xf32, #tpu.memory_space<vmem>>, vector<6x256xf32>
    tpu.vector_store %arg3[%c24, %c0_9], %22 {strides = array<i32>} : memref<128x256xf32, #tpu.memory_space<vmem>>, vector<6x256xf32>,
    %c32 = arith.constant 32 : index
    %c0_10 = arith.constant 0 : index
    %24 = vector.load %arg3[%c32, %c0_10] : memref<128x256xf32, #tpu.memory_space<vmem>>, vector<6x256xf32>
    tpu.vector_store %arg3[%c32, %c0_10], %3 {strides = array<i32>} : memref<128x256xf32, #tpu.memory_space<vmem>>, vector<6x256xf32>,
    %c255_i32 = arith.constant 255 : i32
    %25 = tpu.dynamic_rotate %3 by %c255_i32 dim 1 : vector<6x256xf32>, i32 -> vector<6x256xf32>
    %26 = vector.extract_strided_slice %2 {offsets = [5, 0], sizes = [1, 256], strides = [1, 1]} : vector<16x256xf32> to vector<1x256xf32>
    %27 = vector.broadcast %26 : vector<1x256xf32> to vector<6x256xf32>
    %28 = arith.mulf %25, %27 : vector<6x256xf32>
    %c40 = arith.constant 40 : index
    %c0_11 = arith.constant 0 : index
    %29 = vector.load %arg3[%c40, %c0_11] : memref<128x256xf32, #tpu.memory_space<vmem>>, vector<6x256xf32>
    tpu.vector_store %arg3[%c40, %c0_11], %28 {strides = array<i32>} : memref<128x256xf32, #tpu.memory_space<vmem>>, vector<6x256xf32>,
    %c241_i32 = arith.constant 241 : i32
    %30 = tpu.dynamic_rotate %3 by %c241_i32 dim 1 : vector<6x256xf32>, i32 -> vector<6x256xf32>
    %31 = vector.extract_strided_slice %2 {offsets = [6, 0], sizes = [1, 256], strides = [1, 1]} : vector<16x256xf32> to vector<1x256xf32>
    %32 = vector.broadcast %31 : vector<1x256xf32> to vector<6x256xf32>
    %33 = arith.mulf %30, %32 : vector<6x256xf32>
    %c48 = arith.constant 48 : index
    %c0_12 = arith.constant 0 : index
    %34 = vector.load %arg3[%c48, %c0_12] : memref<128x256xf32, #tpu.memory_space<vmem>>, vector<6x256xf32>
    tpu.vector_store %arg3[%c48, %c0_12], %33 {strides = array<i32>} : memref<128x256xf32, #tpu.memory_space<vmem>>, vector<6x256xf32>,
    %c240_i32 = arith.constant 240 : i32
    %35 = tpu.dynamic_rotate %3 by %c240_i32 dim 1 : vector<6x256xf32>, i32 -> vector<6x256xf32>
    %36 = vector.extract_strided_slice %2 {offsets = [7, 0], sizes = [1, 256], strides = [1, 1]} : vector<16x256xf32> to vector<1x256xf32>
    %37 = vector.broadcast %36 : vector<1x256xf32> to vector<6x256xf32>
    %38 = arith.mulf %35, %37 : vector<6x256xf32>
    %c56 = arith.constant 56 : index
    %c0_13 = arith.constant 0 : index
    %39 = vector.load %arg3[%c56, %c0_13] : memref<128x256xf32, #tpu.memory_space<vmem>>, vector<6x256xf32>
    tpu.vector_store %arg3[%c56, %c0_13], %38 {strides = array<i32>} : memref<128x256xf32, #tpu.memory_space<vmem>>, vector<6x256xf32>,
    %c239_i32 = arith.constant 239 : i32
    %40 = tpu.dynamic_rotate %3 by %c239_i32 dim 1 : vector<6x256xf32>, i32 -> vector<6x256xf32>
    %41 = vector.extract_strided_slice %2 {offsets = [8, 0], sizes = [1, 256], strides = [1, 1]} : vector<16x256xf32> to vector<1x256xf32>
    %42 = vector.broadcast %41 : vector<1x256xf32> to vector<6x256xf32>
    %43 = arith.mulf %40, %42 : vector<6x256xf32>
    %c64 = arith.constant 64 : index
    %c0_14 = arith.constant 0 : index
    %44 = vector.load %arg3[%c64, %c0_14] : memref<128x256xf32, #tpu.memory_space<vmem>>, vector<6x256xf32>
    tpu.vector_store %arg3[%c64, %c0_14], %43 {strides = array<i32>} : memref<128x256xf32, #tpu.memory_space<vmem>>, vector<6x256xf32>,
    %c16_15 = arith.constant 16 : index
    %c0_16 = arith.constant 0 : index
    %45 = vector.load %arg1[%c16_15, %c0_16] : memref<432x256xf32, #tpu.memory_space<vmem>>, vector<8x128xf32>
    %c0_17 = arith.constant 0 : index
    %c0_18 = arith.constant 0 : index
    %46 = vector.load %arg3[%c0_17, %c0_18] : memref<128x256xf32, #tpu.memory_space<vmem>>, vector<128x256xf32>
    %cst_19 = arith.constant dense<0.000000e+00> : vector<8x256xf32>
    %47 = tpu.matmul %45, %46, %cst_19 {dimension_numbers = #tpu.dot_dimension_numbers<[1], [0], [0], [1], [0, 0, 1, 1], [], []>} : vector<8x128xf32>, vector<128x256xf32>, vector<8x256xf32> -> vector<8x256xf32>
    %cst_20 = arith.constant 0.000000e+00 : f32
    %48 = vector.broadcast %cst_20 : f32 to vector<8x256xf32>
    %49 = arith.maximumf %47, %48 : vector<8x256xf32>
    %c17_i32_21 = arith.constant 17 : i32
    %50 = tpu.dynamic_rotate %49 by %c17_i32_21 dim 1 : vector<8x256xf32>, i32 -> vector<8x256xf32>
    %51 = vector.extract_strided_slice %2 {offsets = [0, 0], sizes = [1, 256], strides = [1, 1]} : vector<16x256xf32> to vector<1x256xf32>
    %52 = vector.broadcast %51 : vector<1x256xf32> to vector<8x256xf32>
    %53 = arith.mulf %50, %52 : vector<8x256xf32>
    %c0_22 = arith.constant 0 : index
    %c0_23 = arith.constant 0 : index
    %54 = vector.load %arg3[%c0_22, %c0_23] : memref<128x256xf32, #tpu.memory_space<vmem>>, vector<8x256xf32>
    tpu.vector_store %arg3[%c0_22, %c0_23], %53 {strides = array<i32>} : memref<128x256xf32, #tpu.memory_space<vmem>>, vector<8x256xf32>,
    %c16_i32_24 = arith.constant 16 : i32
    %55 = tpu.dynamic_rotate %49 by %c16_i32_24 dim 1 : vector<8x256xf32>, i32 -> vector<8x256xf32>
    %56 = vector.extract_strided_slice %2 {offsets = [1, 0], sizes = [1, 256], strides = [1, 1]} : vector<16x256xf32> to vector<1x256xf32>
    %57 = vector.broadcast %56 : vector<1x256xf32> to vector<8x256xf32>
    %58 = arith.mulf %55, %57 : vector<8x256xf32>
    %c8_25 = arith.constant 8 : index
    %c0_26 = arith.constant 0 : index
    %59 = vector.load %arg3[%c8_25, %c0_26] : memref<128x256xf32, #tpu.memory_space<vmem>>, vector<8x256xf32>
    tpu.vector_store %arg3[%c8_25, %c0_26], %58 {strides = array<i32>} : memref<128x256xf32, #tpu.memory_space<vmem>>, vector<8x256xf32>,
    %c15_i32_27 = arith.constant 15 : i32
    %60 = tpu.dynamic_rotate %49 by %c15_i32_27 dim 1 : vector<8x256xf32>, i32 -> vector<8x256xf32>
    %61 = vector.extract_strided_slice %2 {offsets = [2, 0], sizes = [1, 256], strides = [1, 1]} : vector<16x256xf32> to vector<1x256xf32>
    %62 = vector.broadcast %61 : vector<1x256xf32> to vector<8x256xf32>
    %63 = arith.mulf %60, %62 : vector<8x256xf32>
    %c16_28 = arith.constant 16 : index
    %c0_29 = arith.constant 0 : index
    %64 = vector.load %arg3[%c16_28, %c0_29] : memref<128x256xf32, #tpu.memory_space<vmem>>, vector<8x256xf32>
    tpu.vector_store %arg3[%c16_28, %c0_29], %63 {strides = array<i32>} : memref<128x256xf32, #tpu.memory_space<vmem>>, vector<8x256xf32>,
    %c1_i32_30 = arith.constant 1 : i32
    %65 = tpu.dynamic_rotate %49 by %c1_i32_30 dim 1 : vector<8x256xf32>, i32 -> vector<8x256xf32>
    %66 = vector.extract_strided_slice %2 {offsets = [3, 0], sizes = [1, 256], strides = [1, 1]} : vector<16x256xf32> to vector<1x256xf32>
    %67 = vector.broadcast %66 : vector<1x256xf32> to vector<8x256xf32>
    %68 = arith.mulf %65, %67 : vector<8x256xf32>
    %c24_31 = arith.constant 24 : index
    %c0_32 = arith.constant 0 : index
    %69 = vector.load %arg3[%c24_31, %c0_32] : memref<128x256xf32, #tpu.memory_space<vmem>>, vector<8x256xf32>
    tpu.vector_store %arg3[%c24_31, %c0_32], %68 {strides = array<i32>} : memref<128x256xf32, #tpu.memory_space<vmem>>, vector<8x256xf32>,
    %c32_33 = arith.constant 32 : index
    %c0_34 = arith.constant 0 : index
    %70 = vector.load %arg3[%c32_33, %c0_34] : memref<128x256xf32, #tpu.memory_space<vmem>>, vector<8x256xf32>
    tpu.vector_store %arg3[%c32_33, %c0_34], %49 {strides = array<i32>} : memref<128x256xf32, #tpu.memory_space<vmem>>, vector<8x256xf32>,
    %c255_i32_35 = arith.constant 255 : i32
    %71 = tpu.dynamic_rotate %49 by %c255_i32_35 dim 1 : vector<8x256xf32>, i32 -> vector<8x256xf32>
    %72 = vector.extract_strided_slice %2 {offsets = [5, 0], sizes = [1, 256], strides = [1, 1]} : vector<16x256xf32> to vector<1x256xf32>
    %73 = vector.broadcast %72 : vector<1x256xf32> to vector<8x256xf32>
    %74 = arith.mulf %71, %73 : vector<8x256xf32>
    %c40_36 = arith.constant 40 : index
    %c0_37 = arith.constant 0 : index
    %75 = vector.load %arg3[%c40_36, %c0_37] : memref<128x256xf32, #tpu.memory_space<vmem>>, vector<8x256xf32>
    tpu.vector_store %arg3[%c40_36, %c0_37], %74 {strides = array<i32>} : memref<128x256xf32, #tpu.memory_space<vmem>>, vector<8x256xf32>,
    %c241_i32_38 = arith.constant 241 : i32
    %76 = tpu.dynamic_rotate %49 by %c241_i32_38 dim 1 : vector<8x256xf32>, i32 -> vector<8x256xf32>
    %77 = vector.extract_strided_slice %2 {offsets = [6, 0], sizes = [1, 256], strides = [1, 1]} : vector<16x256xf32> to vector<1x256xf32>
    %78 = vector.broadcast %77 : vector<1x256xf32> to vector<8x256xf32>
    %79 = arith.mulf %76, %78 : vector<8x256xf32>
    %c48_39 = arith.constant 48 : index
    %c0_40 = arith.constant 0 : index
    %80 = vector.load %arg3[%c48_39, %c0_40] : memref<128x256xf32, #tpu.memory_space<vmem>>, vector<8x256xf32>
    tpu.vector_store %arg3[%c48_39, %c0_40], %79 {strides = array<i32>} : memref<128x256xf32, #tpu.memory_space<vmem>>, vector<8x256xf32>,
    %c240_i32_41 = arith.constant 240 : i32
    %81 = tpu.dynamic_rotate %49 by %c240_i32_41 dim 1 : vector<8x256xf32>, i32 -> vector<8x256xf32>
    %82 = vector.extract_strided_slice %2 {offsets = [7, 0], sizes = [1, 256], strides = [1, 1]} : vector<16x256xf32> to vector<1x256xf32>
    %83 = vector.broadcast %82 : vector<1x256xf32> to vector<8x256xf32>
    %84 = arith.mulf %81, %83 : vector<8x256xf32>
    %c56_42 = arith.constant 56 : index
    %c0_43 = arith.constant 0 : index
    %85 = vector.load %arg3[%c56_42, %c0_43] : memref<128x256xf32, #tpu.memory_space<vmem>>, vector<8x256xf32>
    tpu.vector_store %arg3[%c56_42, %c0_43], %84 {strides = array<i32>} : memref<128x256xf32, #tpu.memory_space<vmem>>, vector<8x256xf32>,
    %c239_i32_44 = arith.constant 239 : i32
    %86 = tpu.dynamic_rotate %49 by %c239_i32_44 dim 1 : vector<8x256xf32>, i32 -> vector<8x256xf32>
    %87 = vector.extract_strided_slice %2 {offsets = [8, 0], sizes = [1, 256], strides = [1, 1]} : vector<16x256xf32> to vector<1x256xf32>
    %88 = vector.broadcast %87 : vector<1x256xf32> to vector<8x256xf32>
    %89 = arith.mulf %86, %88 : vector<8x256xf32>
    %c64_45 = arith.constant 64 : index
    %c0_46 = arith.constant 0 : index
    %90 = vector.load %arg3[%c64_45, %c0_46] : memref<128x256xf32, #tpu.memory_space<vmem>>, vector<8x256xf32>
    tpu.vector_store %arg3[%c64_45, %c0_46], %89 {strides = array<i32>} : memref<128x256xf32, #tpu.memory_space<vmem>>, vector<8x256xf32>,
    %c24_47 = arith.constant 24 : index
    %c0_48 = arith.constant 0 : index
    %91 = vector.load %arg1[%c24_47, %c0_48] : memref<432x256xf32, #tpu.memory_space<vmem>>, vector<8x128xf32>
    %c0_49 = arith.constant 0 : index
    %c0_50 = arith.constant 0 : index
    %92 = vector.load %arg3[%c0_49, %c0_50] : memref<128x256xf32, #tpu.memory_space<vmem>>, vector<128x256xf32>
    %cst_51 = arith.constant dense<0.000000e+00> : vector<8x256xf32>
    %93 = tpu.matmul %91, %92, %cst_51 {dimension_numbers = #tpu.dot_dimension_numbers<[1], [0], [0], [1], [0, 0, 1, 1], [], []>} : vector<8x128xf32>, vector<128x256xf32>, vector<8x256xf32> -> vector<8x256xf32>
    %cst_52 = arith.constant 0.000000e+00 : f32
    %94 = vector.broadcast %cst_52 : f32 to vector<8x256xf32>
    %95 = arith.maximumf %93, %94 : vector<8x256xf32>
    %c255_i32_53 = arith.constant 255 : i32
    %96 = tpu.dynamic_rotate %95 by %c255_i32_53 dim 1 : vector<8x256xf32>, i32 -> vector<8x256xf32>
    %97 = arith.maximumf %95, %96 : vector<8x256xf32>
    %c240_i32_54 = arith.constant 240 : i32
    %98 = tpu.dynamic_rotate %97 by %c240_i32_54 dim 1 : vector<8x256xf32>, i32 -> vector<8x256xf32>
    %99 = arith.maximumf %97, %98 : vector<8x256xf32>
    %c32_55 = arith.constant 32 : index
    %c0_56 = arith.constant 0 : index
    %100 = vector.load %arg1[%c32_55, %c0_56] : memref<432x256xf32, #tpu.memory_space<vmem>>, vector<256x128xf32>
    %cst_57 = arith.constant dense<0.000000e+00> : vector<8x128xf32>
    %101 = tpu.matmul %99, %100, %cst_57 {dimension_numbers = #tpu.dot_dimension_numbers<[1], [0], [0], [1], [0, 0, 1, 1], [], []>} : vector<8x256xf32>, vector<256x128xf32>, vector<8x128xf32> -> vector<8x128xf32>
    %c416 = arith.constant 416 : index
    %c0_58 = arith.constant 0 : index
    %102 = vector.load %arg1[%c416, %c0_58] : memref<432x256xf32, #tpu.memory_space<vmem>>, vector<8x128xf32>
    %103 = arith.mulf %101, %102 : vector<8x128xf32>
    %c424 = arith.constant 424 : index
    %c0_59 = arith.constant 0 : index
    %104 = vector.load %arg1[%c424, %c0_59] : memref<432x256xf32, #tpu.memory_space<vmem>>, vector<2x8xf32>
    %cst_60 = arith.constant dense<0.000000e+00> : vector<2x128xf32>
    %105 = tpu.matmul %104, %103, %cst_60 {dimension_numbers = #tpu.dot_dimension_numbers<[1], [0], [0], [1], [0, 0, 1, 1], [], []>} : vector<2x8xf32>, vector<8x128xf32>, vector<2x128xf32> -> vector<2x128xf32>
    %c64_i32 = arith.constant 64 : i32
    %106 = tpu.dynamic_rotate %105 by %c64_i32 dim 1 : vector<2x128xf32>, i32 -> vector<2x128xf32>
    %107 = arith.addf %105, %106 : vector<2x128xf32>
    %c96_i32 = arith.constant 96 : i32
    %108 = tpu.dynamic_rotate %107 by %c96_i32 dim 1 : vector<2x128xf32>, i32 -> vector<2x128xf32>
    %109 = arith.addf %107, %108 : vector<2x128xf32>
    %c426 = arith.constant 426 : index
    %c0_61 = arith.constant 0 : index
    %110 = vector.load %arg1[%c426, %c0_61] : memref<432x256xf32, #tpu.memory_space<vmem>>, vector<1x128xf32>
    %111 = vector.broadcast %110 : vector<1x128xf32> to vector<2x128xf32>
    %112 = arith.addf %109, %111 : vector<2x128xf32>
    %cst_62 = arith.constant 0.000000e+00 : f32
    %113 = vector.broadcast %cst_62 : f32 to vector<2x128xf32>
    %114 = arith.maximumf %112, %113 : vector<2x128xf32>
    %c288 = arith.constant 288 : index
    %c0_63 = arith.constant 0 : index
    %115 = vector.load %arg1[%c288, %c0_63] : memref<432x256xf32, #tpu.memory_space<vmem>>, vector<128x128xf32>
    %cst_64 = arith.constant dense<0.000000e+00> : vector<2x128xf32>
    %116 = tpu.matmul %114, %115, %cst_64 {dimension_numbers = #tpu.dot_dimension_numbers<[1], [0], [0], [1], [0, 0, 1, 1], [], []>} : vector<2x128xf32>, vector<128x128xf32>, vector<2x128xf32> -> vector<2x128xf32>
    %c427 = arith.constant 427 : index
    %c0_65 = arith.constant 0 : index
    %117 = vector.load %arg1[%c427, %c0_65] : memref<432x256xf32, #tpu.memory_space<vmem>>, vector<1x128xf32>
    %118 = vector.broadcast %117 : vector<1x128xf32> to vector<2x128xf32>
    %119 = arith.addf %116, %118 : vector<2x128xf32>
    %c0_66 = arith.constant 0 : index
    %c0_67 = arith.constant 0 : index
    %120 = vector.load %arg2[%c0_66, %c0_67] : memref<2x128xf32, #tpu.memory_space<vmem>>, vector<2x128xf32>
    tpu.vector_store %arg2[%c0_66, %c0_67], %119 {strides = array<i32>} : memref<2x128xf32, #tpu.memory_space<vmem>>, vector<2x128xf32>,
    return
  }
}

</mosaic_0001>

<llo_original>
// kernel: forward.1
$region0: #{forward.1}
  #allocation0 [shape = 'u32[]', space=smem, size = 0x4, offset = 0x4, fixed_abs, tag = 'smem constant byte address 0x4 - core index']
  #allocation1 [shape = 'u32[144,128]{1,0:T(1,128)}', space=vmem, size = 0x12000, scoped, tag = 'internal scratch']
  #allocation2 [shape = 'f32[128,256]{1,0:T(8,128)}', space=vmem, size = 0x20000, scoped, tag = 'scratch operand']
  %s0 = inlined_call_operand.vmem [shape: f32[6,256], index: 0, kind: input, shape index: {}]
  %s1 = inlined_call_operand.hbm [shape: f32[432,256], index: 1, kind: input, shape index: {}]
  %s2 = inlined_call_operand.hbm [shape: f32[2,128], index: 2, kind: output, shape index: {}]
  %s3 = sld [smem:[#allocation0]]
  $region22: #{forward.1} parent=0
    _
  %s5 = ssub.s32 1, %s3
  %s6 = scalar_select 0, %s5, %s3
  $region1: #{forward.1} parent=0
    #allocation3 [shape = 'u8[442368]{0}', space=vmem, size = 0x6c000, scoped, tag = 'input window, operand 1, single buffered']
    #allocation4 [shape = 's32[1]{0}', space=sflag, size = 0x4, scoped, tag = 'scoped memory for forward.1']
    #allocation5 [shape = 's32[1]{0}', space=sflag, size = 0x4, scoped, tag = 'scoped memory for forward.1']
    #allocation6 [shape = 'u8[1024]{0}', space=vmem, size = 0x400, scoped, tag = 'output window, operand 0, single buffered']
    %7 = vsyncpa [#allocation4], 0
    %8 = vsyncpa [#allocation5], 0
    // Predicated region
    $region2: #{forward.1} parent=1 // pred_check
      _
    $region3: #{forward.1} parent=1 // pred_check_branch
      %10 = sbr.rel (0) target = $region5
    $region4: #{forward.1} parent=1 // pred_region
      _
    $region5: #{forward.1} parent=1 // pred_fallthru
      _
    // Predicated region
    $region6: #{forward.1} parent=1 // pred_check
      _
    $region7: #{forward.1} parent=1 // pred_check_branch
      %12 = sbr.rel (0) target = $region9
    $region8: #{forward.1} parent=1 // pred_region
      %s14 = ssub.s32 13824, 13824
      %15 = vsyncadd [#allocation4], %s14
      %s16 = sshll.u32 [#allocation3], 4
      %s17 = int_to_ptr.vmem [resolvable:$true] %s16
      %22 = dma.hbm_to_vmem [thread:$0]  %s1, 13824, %s17, [#allocation4], 256, 256, 16
    $region9: #{forward.1} parent=1 // pred_fallthru
      _
    // Predicated region
    $region10: #{forward.1} parent=1 // pred_check
      _
    $region11: #{forward.1} parent=1 // pred_check_branch
      %24 = sbr.rel (0) target = $region13
    $region12: #{forward.1} parent=1 // pred_region
      %25 = dma.done [#allocation4], 13824
    $region13: #{forward.1} parent=1 // pred_fallthru
      _
    %26 = vst [vmem:[#allocation2] sm:$0xff] 1.0
    %27 = vst [vmem:[#allocation2 + $0x8] sm:$0xff] 1.0
    %28 = vst [vmem:[#allocation2 + $0x10] sm:$0xff] 1.0
    %29 = vst [vmem:[#allocation2 + $0x18] sm:$0xff] 1.0
    %30 = vst [vmem:[#allocation2 + $0x20] sm:$0xff] 1.0
    %31 = vst [vmem:[#allocation2 + $0x28] sm:$0xff] 1.0
    %32 = vst [vmem:[#allocation2 + $0x30] sm:$0xff] 1.0
    %33 = vst [vmem:[#allocation2 + $0x38] sm:$0xff] 1.0
    %34 = vst [vmem:[#allocation2 + $0x40] sm:$0xff] 1.0
    %35 = vst [vmem:[#allocation2 + $0x48] sm:$0xff] 1.0
    %36 = vst [vmem:[#allocation2 + $0x50] sm:$0xff] 1.0
    %37 = vst [vmem:[#allocation2 + $0x58] sm:$0xff] 1.0
    %38 = vst [vmem:[#allocation2 + $0x60] sm:$0xff] 1.0
    %39 = vst [vmem:[#allocation2 + $0x68] sm:$0xff] 1.0
    %40 = vst [vmem:[#allocation2 + $0x70] sm:$0xff] 1.0
    %41 = vst [vmem:[#allocation2 + $0x78] sm:$0xff] 1.0
    %42 = vst [vmem:[#allocation2 + $0x80] sm:$0xff] 1.0
    %43 = vst [vmem:[#allocation2 + $0x88] sm:$0xff] 1.0
    %44 = vst [vmem:[#allocation2 + $0x90] sm:$0xff] 1.0
    %45 = vst [vmem:[#allocation2 + $0x98] sm:$0xff] 1.0
    %46 = vst [vmem:[#allocation2 + $0xa0] sm:$0xff] 1.0
    %47 = vst [vmem:[#allocation2 + $0xa8] sm:$0xff] 1.0
    %48 = vst [vmem:[#allocation2 + $0xb0] sm:$0xff] 1.0
    %49 = vst [vmem:[#allocation2 + $0xb8] sm:$0xff] 1.0
    %50 = vst [vmem:[#allocation2 + $0xc0] sm:$0xff] 1.0
    %51 = vst [vmem:[#allocation2 + $0xc8] sm:$0xff] 1.0
    %52 = vst [vmem:[#allocation2 + $0xd0] sm:$0xff] 1.0
    %53 = vst [vmem:[#allocation2 + $0xd8] sm:$0xff] 1.0
    %54 = vst [vmem:[#allocation2 + $0xe0] sm:$0xff] 1.0
    %55 = vst [vmem:[#allocation2 + $0xe8] sm:$0xff] 1.0
    %56 = vst [vmem:[#allocation2 + $0xf0] sm:$0xff] 1.0
    %57 = vst [vmem:[#allocation2 + $0xf8] sm:$0xff] 1.0
    %v58 = vld [vmem:[#allocation3] sm:$0xff]
    %v59 = vld [vmem:[#allocation3 + $0x8] sm:$0xff]
    %v60 = vld [vmem:[#allocation3 + $0x10] sm:$0xff]
    %v61 = vld [vmem:[#allocation3 + $0x18] sm:$0xff]
    %v62 = vld [vmem:[%s0] sm:$0x3f]
    %v63 = vld [vmem:[%s0 + $0x8] sm:$0x3f]
    %64 = vrot.lane.b32.xlu0 %v62, 17
    %v65 = vpop.permute.xlu0 %64
    %66 = vrot.lane.b32.xlu0 %v63, 17
    %v67 = vpop.permute.xlu0 %66
    %v68 = vlaneseq
    %v69 = vand.u32 %v68, 127
    %vm70 = vcmp.lt.s32.totalorder %v69, 17
    %v71 = vsel %vm70, %v65, %v67
    %v72 = vsel %vm70, %v67, %v65
    %v73 = vlaneseq
    %v74 = vshrl.u32 %v73, 7
    %v75 = vsub.s32 0, %v74
    %v76 = vrot.slane %v58, %v75
    %v77 = vlaneseq
    %v78 = vshrl.u32 %v77, 7
    %v79 = vsub.s32 0, %v78
    %v80 = vrot.slane %v59, %v79
    %v81 = vmul.f32 %v72, %v76
    %v82 = vmul.f32 %v71, %v80
    %83 = vst [vmem:[#allocation2] sm:$0x3f] %v81
    %84 = vst [vmem:[#allocation2 + $0x8] sm:$0x3f] %v82
    %85 = vrot.lane.b32.xlu0 %v62, 16
    %v86 = vpop.permute.xlu0 %85
    %87 = vrot.lane.b32.xlu0 %v63, 16
    %v88 = vpop.permute.xlu0 %87
    %vm89 = vcmp.lt.s32.totalorder %v69, 16
    %v90 = vsel %vm89, %v86, %v88
    %v91 = vsel %vm89, %v88, %v86
    %v92 = vlaneseq
    %v93 = vshrl.u32 %v92, 7
    %v94 = vsub.s32 1, %v93
    %v95 = vrot.slane %v58, %v94
    %v96 = vlaneseq
    %v97 = vshrl.u32 %v96, 7
    %v98 = vsub.s32 1, %v97
    %v99 = vrot.slane %v59, %v98
    %v100 = vmul.f32 %v91, %v95
    %v101 = vmul.f32 %v90, %v99
    %102 = vst [vmem:[#allocation2 + $0x10] sm:$0x3f] %v100
    %103 = vst [vmem:[#allocation2 + $0x18] sm:$0x3f] %v101
    %104 = vrot.lane.b32.xlu0 %v62, 15
    %v105 = vpop.permute.xlu0 %104
    %106 = vrot.lane.b32.xlu0 %v63, 15
    %v107 = vpop.permute.xlu0 %106
    %vm108 = vcmp.lt.s32.totalorder %v69, 15
    %v109 = vsel %vm108, %v105, %v107
    %v110 = vsel %vm108, %v107, %v105
    %v111 = vlaneseq
    %v112 = vshrl.u32 %v111, 7
    %v113 = vsub.s32 2, %v112
    %v114 = vrot.slane %v58, %v113
    %v115 = vlaneseq
    %v116 = vshrl.u32 %v115, 7
    %v117 = vsub.s32 2, %v116
    %v118 = vrot.slane %v59, %v117
    %v119 = vmul.f32 %v110, %v114
    %v120 = vmul.f32 %v109, %v118
    %121 = vst [vmem:[#allocation2 + $0x20] sm:$0x3f] %v119
    %122 = vst [vmem:[#allocation2 + $0x28] sm:$0x3f] %v120
    %123 = vrot.lane.b32.xlu0 %v62, 1
    %v124 = vpop.permute.xlu0 %123
    %125 = vrot.lane.b32.xlu0 %v63, 1
    %v126 = vpop.permute.xlu0 %125
    %vm127 = vcmp.lt.s32.totalorder %v69, 1
    %v128 = vsel %vm127, %v124, %v126
    %v129 = vsel %vm127, %v126, %v124
    %v130 = vlaneseq
    %v131 = vshrl.u32 %v130, 7
    %v132 = vsub.s32 3, %v131
    %v133 = vrot.slane %v58, %v132
    %v134 = vlaneseq
    %v135 = vshrl.u32 %v134, 7
    %v136 = vsub.s32 3, %v135
    %v137 = vrot.slane %v59, %v136
    %v138 = vmul.f32 %v129, %v133
    %v139 = vmul.f32 %v128, %v137
    %140 = vst [vmem:[#allocation2 + $0x30] sm:$0x3f] %v138
    %141 = vst [vmem:[#allocation2 + $0x38] sm:$0x3f] %v139
    %142 = vst [vmem:[#allocation2 + $0x40] sm:$0x3f] %v62
    %143 = vst [vmem:[#allocation2 + $0x48] sm:$0x3f] %v63
    %144 = vrot.lane.b32.xlu0 %v62, 127
    %v145 = vpop.permute.xlu0 %144
    %146 = vrot.lane.b32.xlu0 %v63, 127
    %v147 = vpop.permute.xlu0 %146
    %vm148 = vcmp.lt.s32.totalorder %v69, 127
    %v149 = vsel %vm148, %v145, %v147
    %v150 = vsel %vm148, %v147, %v145
    %v151 = vlaneseq
    %v152 = vshrl.u32 %v151, 7
    %v153 = vsub.s32 5, %v152
    %v154 = vrot.slane %v58, %v153
    %v155 = vlaneseq
    %v156 = vshrl.u32 %v155, 7
    %v157 = vsub.s32 5, %v156
    %v158 = vrot.slane %v59, %v157
    %v159 = vmul.f32 %v149, %v154
    %v160 = vmul.f32 %v150, %v158
    %161 = vst [vmem:[#allocation2 + $0x50] sm:$0x3f] %v159
    %162 = vst [vmem:[#allocation2 + $0x58] sm:$0x3f] %v160
    %163 = vrot.lane.b32.xlu0 %v62, 113
    %v164 = vpop.permute.xlu0 %163
    %165 = vrot.lane.b32.xlu0 %v63, 113
    %v166 = vpop.permute.xlu0 %165
    %vm167 = vcmp.lt.s32.totalorder %v69, 113
    %v168 = vsel %vm167, %v164, %v166
    %v169 = vsel %vm167, %v166, %v164
    %v170 = vlaneseq
    %v171 = vshrl.u32 %v170, 7
    %v172 = vsub.s32 6, %v171
    %v173 = vrot.slane %v58, %v172
    %v174 = vlaneseq
    %v175 = vshrl.u32 %v174, 7
    %v176 = vsub.s32 6, %v175
    %v177 = vrot.slane %v59, %v176
    %v178 = vmul.f32 %v168, %v173
    %v179 = vmul.f32 %v169, %v177
    %180 = vst [vmem:[#allocation2 + $0x60] sm:$0x3f] %v178
    %181 = vst [vmem:[#allocation2 + $0x68] sm:$0x3f] %v179
    %182 = vrot.lane.b32.xlu0 %v62, 112
    %v183 = vpop.permute.xlu0 %182
    %184 = vrot.lane.b32.xlu0 %v63, 112
    %v185 = vpop.permute.xlu0 %184
    %vm186 = vcmp.lt.s32.totalorder %v69, 112
    %v187 = vsel %vm186, %v183, %v185
    %v188 = vsel %vm186, %v185, %v183
    %v189 = vlaneseq
    %v190 = vshrl.u32 %v189, 7
    %v191 = vsub.s32 7, %v190
    %v192 = vrot.slane %v58, %v191
    %v193 = vlaneseq
    %v194 = vshrl.u32 %v193, 7
    %v195 = vsub.s32 7, %v194
    %v196 = vrot.slane %v59, %v195
    %v197 = vmul.f32 %v187, %v192
    %v198 = vmul.f32 %v188, %v196
    %199 = vst [vmem:[#allocation2 + $0x70] sm:$0x3f] %v197
    %200 = vst [vmem:[#allocation2 + $0x78] sm:$0x3f] %v198
    %201 = vrot.lane.b32.xlu0 %v62, 111
    %v202 = vpop.permute.xlu0 %201
    %203 = vrot.lane.b32.xlu0 %v63, 111
    %v204 = vpop.permute.xlu0 %203
    %vm205 = vcmp.lt.s32.totalorder %v69, 111
    %v206 = vsel %vm205, %v202, %v204
    %v207 = vsel %vm205, %v204, %v202
    %v208 = vlaneseq
    %v209 = vshrl.u32 %v208, 7
    %v210 = vsub.s32 0, %v209
    %v211 = vrot.slane %v60, %v210
    %v212 = vlaneseq
    %v213 = vshrl.u32 %v212, 7
    %v214 = vsub.s32 0, %v213
    %v215 = vrot.slane %v61, %v214
    %v216 = vmul.f32 %v206, %v211
    %v217 = vmul.f32 %v207, %v215
    %218 = vst [vmem:[#allocation2 + $0x80] sm:$0x3f] %v216
    %219 = vst [vmem:[#allocation2 + $0x88] sm:$0x3f] %v217
    %v220 = vld [vmem:[#allocation3 + $0x20] sm:$0xff]
    %v221 = vld [vmem:[#allocation2] sm:$0xff]
    %v222 = vld [vmem:[#allocation2 + $0x8] sm:$0xff]
    %v223 = vld [vmem:[#allocation2 + $0x10] sm:$0xff]
    %v224 = vld [vmem:[#allocation2 + $0x18] sm:$0xff]
    %v225 = vld [vmem:[#allocation2 + $0x20] sm:$0xff]
    %v226 = vld [vmem:[#allocation2 + $0x28] sm:$0xff]
    %v227 = vld [vmem:[#allocation2 + $0x30] sm:$0xff]
    %v228 = vld [vmem:[#allocation2 + $0x38] sm:$0xff]
    %v229 = vld [vmem:[#allocation2 + $0x40] sm:$0xff]
    %v230 = vld [vmem:[#allocation2 + $0x48] sm:$0xff]
    %v231 = vld [vmem:[#allocation2 + $0x50] sm:$0xff]
    %v232 = vld [vmem:[#allocation2 + $0x58] sm:$0xff]
    %v233 = vld [vmem:[#allocation2 + $0x60] sm:$0xff]
    %v234 = vld [vmem:[#allocation2 + $0x68] sm:$0xff]
    %v235 = vld [vmem:[#allocation2 + $0x70] sm:$0xff]
    %v236 = vld [vmem:[#allocation2 + $0x78] sm:$0xff]
    %v237 = vld [vmem:[#allocation2 + $0x80] sm:$0xff]
    %v238 = vld [vmem:[#allocation2 + $0x88] sm:$0xff]
    %v239 = vld [vmem:[#allocation2 + $0x90] sm:$0xff]
    %v240 = vld [vmem:[#allocation2 + $0x98] sm:$0xff]
    %v241 = vld [vmem:[#allocation2 + $0xa0] sm:$0xff]
    %v242 = vld [vmem:[#allocation2 + $0xa8] sm:$0xff]
    %v243 = vld [vmem:[#allocation2 + $0xb0] sm:$0xff]
    %v244 = vld [vmem:[#allocation2 + $0xb8] sm:$0xff]
    %v245 = vld [vmem:[#allocation2 + $0xc0] sm:$0xff]
    %v246 = vld [vmem:[#allocation2 + $0xc8] sm:$0xff]
    %v247 = vld [vmem:[#allocation2 + $0xd0] sm:$0xff]
    %v248 = vld [vmem:[#allocation2 + $0xd8] sm:$0xff]
    %v249 = vld [vmem:[#allocation2 + $0xe0] sm:$0xff]
    %v250 = vld [vmem:[#allocation2 + $0xe8] sm:$0xff]
    %v251 = vld [vmem:[#allocation2 + $0xf0] sm:$0xff]
    %v252 = vld [vmem:[#allocation2 + $0xf8] sm:$0xff]
    %253 = vmatprep.subr.mxu0 %v222
    %254 = vmatpush1.msra.mxu0 %v221
    %255 = vmatprep.subr.mxu0 %v224
    %256 = vmatpush1.msra.mxu0 %v223
    %257 = vmatprep.subr.mxu0 %v226
    %258 = vmatpush1.msra.mxu0 %v225
    %259 = vmatprep.subr.mxu0 %v228
    %260 = vmatpush1.msra.mxu0 %v227
    %261 = vmatprep.subr.mxu0 %v230
    %262 = vmatpush1.msra.mxu0 %v229
    %263 = vmatprep.subr.mxu0 %v232
    %264 = vmatpush1.msra.mxu0 %v231
    %265 = vmatprep.subr.mxu0 %v234
    %266 = vmatpush1.msra.mxu0 %v233
    %267 = vmatprep.subr.mxu0 %v236
    %268 = vmatpush1.msra.mxu0 %v235
    %269 = vmatprep.subr.mxu0 %v238
    %270 = vmatpush1.msra.mxu0 %v237
    %271 = vmatprep.subr.mxu0 %v240
    %272 = vmatpush1.msra.mxu0 %v239
    %273 = vmatprep.subr.mxu0 %v242
    %274 = vmatpush1.msra.mxu0 %v241
    %275 = vmatprep.subr.mxu0 %v244
    %276 = vmatpush1.msra.mxu0 %v243
    %277 = vmatprep.subr.mxu0 %v246
    %278 = vmatpush1.msra.mxu0 %v245
    %279 = vmatprep.subr.mxu0 %v248
    %280 = vmatpush1.msra.mxu0 %v247
    %281 = vmatprep.subr.mxu0 %v250
    %282 = vmatpush1.msra.mxu0 %v249
    %283 = vmatprep.subr.mxu0 %v252
    %284 = vmatpush1.msra.mxu0 %v251
    %285 = vmatprep.subr.mxu0 0.0
    %286 = vmatpush1.msra.mxu0 0.0
    %287 = vmatprep.subr.mxu0 0.0
    %288 = vmatpush1.msra.mxu0 0.0
    %289 = vmatprep.subr.mxu0 0.0
    %290 = vmatpush1.msra.mxu0 0.0
    %291 = vmatprep.subr.mxu0 0.0
    %292 = vmatpush1.msra.mxu0 0.0
    %293 = vmatprep.subr.mxu0 0.0
    %294 = vmatpush1.msra.mxu0 0.0
    %295 = vmatprep.subr.mxu0 0.0
    %296 = vmatpush1.msra.mxu0 0.0
    %297 = vmatprep.subr.mxu0 0.0
    %298 = vmatpush1.msra.mxu0 0.0
    %299 = vmatprep.subr.mxu0 0.0
    %300 = vmatpush1.msra.mxu0 0.0
    %301 = vmatprep.subr.mxu0 0.0
    %302 = vmatpush1.msra.mxu0 0.0
    %303 = vmatprep.subr.mxu0 0.0
    %304 = vmatpush1.msra.mxu0 0.0
    %305 = vmatprep.subr.mxu0 0.0
    %306 = vmatpush1.msra.mxu0 0.0
    %307 = vmatprep.subr.mxu0 0.0
    %308 = vmatpush1.msra.mxu0 0.0
    %309 = vmatprep.subr.mxu0 0.0
    %310 = vmatpush1.msra.mxu0 0.0
    %311 = vmatprep.subr.mxu0 0.0
    %312 = vmatpush1.msra.mxu0 0.0
    %313 = vmatprep.subr.mxu0 0.0
    %314 = vmatpush1.msra.mxu0 0.0
    %315 = vmatprep.subr.mxu0 0.0
    %316 = vmatpush1.msra.mxu0 0.0
    %317 = vmatprep.mubr.f32.mxu0 0.0
    %318 = vmatmul.mubr.f32.gmra.mrb[0].mxu0 %v220
    %v319 = vpop.f32.mrb[0].mxu0
    %v320 = vadd.f32 0.0, %v319
    %v321 = vpop.f32.mrb[0].mxu0
    %v322 = vadd.f32 0.0, %v321
    %323 = vdwg.mxu0
    %v324 = vmax.f32 %v320, 0.0
    %v325 = vmax.f32 %v322, 0.0
    %326 = vrot.lane.b32.xlu0 %v324, 17
    %v327 = vpop.permute.xlu0 %326
    %328 = vrot.lane.b32.xlu0 %v325, 17
    %v329 = vpop.permute.xlu0 %328
    %v330 = vsel %vm70, %v327, %v329
    %v331 = vsel %vm70, %v329, %v327
    %v332 = vmul.f32 %v331, %v76
    %v333 = vmul.f32 %v330, %v80
    %334 = vst [vmem:[#allocation2] sm:$0xff] %v332
    %335 = vst [vmem:[#allocation2 + $0x8] sm:$0xff] %v333
    %336 = vrot.lane.b32.xlu0 %v324, 16
    %v337 = vpop.permute.xlu0 %336
    %338 = vrot.lane.b32.xlu0 %v325, 16
    %v339 = vpop.permute.xlu0 %338
    %v340 = vsel %vm89, %v337, %v339
    %v341 = vsel %vm89, %v339, %v337
    %v342 = vmul.f32 %v341, %v95
    %v343 = vmul.f32 %v340, %v99
    %344 = vst [vmem:[#allocation2 + $0x10] sm:$0xff] %v342
    %345 = vst [vmem:[#allocation2 + $0x18] sm:$0xff] %v343
    %346 = vrot.lane.b32.xlu0 %v324, 15
    %v347 = vpop.permute.xlu0 %346
    %348 = vrot.lane.b32.xlu0 %v325, 15
    %v349 = vpop.permute.xlu0 %348
    %v350 = vsel %vm108, %v347, %v349
    %v351 = vsel %vm108, %v349, %v347
    %v352 = vmul.f32 %v351, %v114
    %v353 = vmul.f32 %v350, %v118
    %354 = vst [vmem:[#allocation2 + $0x20] sm:$0xff] %v352
    %355 = vst [vmem:[#allocation2 + $0x28] sm:$0xff] %v353
    %356 = vrot.lane.b32.xlu0 %v324, 1
    %v357 = vpop.permute.xlu0 %356
    %358 = vrot.lane.b32.xlu0 %v325, 1
    %v359 = vpop.permute.xlu0 %358
    %v360 = vsel %vm127, %v357, %v359
    %v361 = vsel %vm127, %v359, %v357
    %v362 = vmul.f32 %v361, %v133
    %v363 = vmul.f32 %v360, %v137
    %364 = vst [vmem:[#allocation2 + $0x30] sm:$0xff] %v362
    %365 = vst [vmem:[#allocation2 + $0x38] sm:$0xff] %v363
    %366 = vst [vmem:[#allocation2 + $0x40] sm:$0xff] %v324
    %367 = vst [vmem:[#allocation2 + $0x48] sm:$0xff] %v325
    %368 = vrot.lane.b32.xlu0 %v324, 127
    %v369 = vpop.permute.xlu0 %368
    %370 = vrot.lane.b32.xlu0 %v325, 127
    %v371 = vpop.permute.xlu0 %370
    %v372 = vsel %vm148, %v369, %v371
    %v373 = vsel %vm148, %v371, %v369
    %v374 = vmul.f32 %v372, %v154
    %v375 = vmul.f32 %v373, %v158
    %376 = vst [vmem:[#allocation2 + $0x50] sm:$0xff] %v374
    %377 = vst [vmem:[#allocation2 + $0x58] sm:$0xff] %v375
    %378 = vrot.lane.b32.xlu0 %v324, 113
    %v379 = vpop.permute.xlu0 %378
    %380 = vrot.lane.b32.xlu0 %v325, 113
    %v381 = vpop.permute.xlu0 %380
    %v382 = vsel %vm167, %v379, %v381
    %v383 = vsel %vm167, %v381, %v379
    %v384 = vmul.f32 %v382, %v173
    %v385 = vmul.f32 %v383, %v177
    %386 = vst [vmem:[#allocation2 + $0x60] sm:$0xff] %v384
    %387 = vst [vmem:[#allocation2 + $0x68] sm:$0xff] %v385
    %388 = vrot.lane.b32.xlu0 %v324, 112
    %v389 = vpop.permute.xlu0 %388
    %390 = vrot.lane.b32.xlu0 %v325, 112
    %v391 = vpop.permute.xlu0 %390
    %v392 = vsel %vm186, %v389, %v391
    %v393 = vsel %vm186, %v391, %v389
    %v394 = vmul.f32 %v392, %v192
    %v395 = vmul.f32 %v393, %v196
    %396 = vst [vmem:[#allocation2 + $0x70] sm:$0xff] %v394
    %397 = vst [vmem:[#allocation2 + $0x78] sm:$0xff] %v395
    %398 = vrot.lane.b32.xlu0 %v324, 111
    %v399 = vpop.permute.xlu0 %398
    %400 = vrot.lane.b32.xlu0 %v325, 111
    %v401 = vpop.permute.xlu0 %400
    %v402 = vsel %vm205, %v399, %v401
    %v403 = vsel %vm205, %v401, %v399
    %v404 = vmul.f32 %v402, %v211
    %v405 = vmul.f32 %v403, %v215
    %406 = vst [vmem:[#allocation2 + $0x80] sm:$0xff] %v404
    %407 = vst [vmem:[#allocation2 + $0x88] sm:$0xff] %v405
    %v408 = vld [vmem:[#allocation3 + $0x30] sm:$0xff]
    %v409 = vld [vmem:[#allocation2] sm:$0xff]
    %v410 = vld [vmem:[#allocation2 + $0x8] sm:$0xff]
    %v411 = vld [vmem:[#allocation2 + $0x10] sm:$0xff]
    %v412 = vld [vmem:[#allocation2 + $0x18] sm:$0xff]
    %v413 = vld [vmem:[#allocation2 + $0x20] sm:$0xff]
    %v414 = vld [vmem:[#allocation2 + $0x28] sm:$0xff]
    %v415 = vld [vmem:[#allocation2 + $0x30] sm:$0xff]
    %v416 = vld [vmem:[#allocation2 + $0x38] sm:$0xff]
    %v417 = vld [vmem:[#allocation2 + $0x40] sm:$0xff]
    %v418 = vld [vmem:[#allocation2 + $0x48] sm:$0xff]
    %v419 = vld [vmem:[#allocation2 + $0x50] sm:$0xff]
    %v420 = vld [vmem:[#allocation2 + $0x58] sm:$0xff]
    %v421 = vld [vmem:[#allocation2 + $0x60] sm:$0xff]
    %v422 = vld [vmem:[#allocation2 + $0x68] sm:$0xff]
    %v423 = vld [vmem:[#allocation2 + $0x70] sm:$0xff]
    %v424 = vld [vmem:[#allocation2 + $0x78] sm:$0xff]
    %v425 = vld [vmem:[#allocation2 + $0x80] sm:$0xff]
    %v426 = vld [vmem:[#allocation2 + $0x88] sm:$0xff]
    %v427 = vld [vmem:[#allocation2 + $0x90] sm:$0xff]
    %v428 = vld [vmem:[#allocation2 + $0x98] sm:$0xff]
    %v429 = vld [vmem:[#allocation2 + $0xa0] sm:$0xff]
    %v430 = vld [vmem:[#allocation2 + $0xa8] sm:$0xff]
    %v431 = vld [vmem:[#allocation2 + $0xb0] sm:$0xff]
    %v432 = vld [vmem:[#allocation2 + $0xb8] sm:$0xff]
    %v433 = vld [vmem:[#allocation2 + $0xc0] sm:$0xff]
    %v434 = vld [vmem:[#allocation2 + $0xc8] sm:$0xff]
    %v435 = vld [vmem:[#allocation2 + $0xd0] sm:$0xff]
    %v436 = vld [vmem:[#allocation2 + $0xd8] sm:$0xff]
    %v437 = vld [vmem:[#allocation2 + $0xe0] sm:$0xff]
    %v438 = vld [vmem:[#allocation2 + $0xe8] sm:$0xff]
    %v439 = vld [vmem:[#allocation2 + $0xf0] sm:$0xff]
    %v440 = vld [vmem:[#allocation2 + $0xf8] sm:$0xff]
    %441 = vmatprep.subr.mxu0 %v410
    %442 = vmatpush1.msra.mxu0 %v409
    %443 = vmatprep.subr.mxu0 %v412
    %444 = vmatpush1.msra.mxu0 %v411
    %445 = vmatprep.subr.mxu0 %v414
    %446 = vmatpush1.msra.mxu0 %v413
    %447 = vmatprep.subr.mxu0 %v416
    %448 = vmatpush1.msra.mxu0 %v415
    %449 = vmatprep.subr.mxu0 %v418
    %450 = vmatpush1.msra.mxu0 %v417
    %451 = vmatprep.subr.mxu0 %v420
    %452 = vmatpush1.msra.mxu0 %v419
    %453 = vmatprep.subr.mxu0 %v422
    %454 = vmatpush1.msra.mxu0 %v421
    %455 = vmatprep.subr.mxu0 %v424
    %456 = vmatpush1.msra.mxu0 %v423
    %457 = vmatprep.subr.mxu0 %v426
    %458 = vmatpush1.msra.mxu0 %v425
    %459 = vmatprep.subr.mxu0 %v428
    %460 = vmatpush1.msra.mxu0 %v427
    %461 = vmatprep.subr.mxu0 %v430
    %462 = vmatpush1.msra.mxu0 %v429
    %463 = vmatprep.subr.mxu0 %v432
    %464 = vmatpush1.msra.mxu0 %v431
    %465 = vmatprep.subr.mxu0 %v434
    %466 = vmatpush1.msra.mxu0 %v433
    %467 = vmatprep.subr.mxu0 %v436
    %468 = vmatpush1.msra.mxu0 %v435
    %469 = vmatprep.subr.mxu0 %v438
    %470 = vmatpush1.msra.mxu0 %v437
    %471 = vmatprep.subr.mxu0 %v440
    %472 = vmatpush1.msra.mxu0 %v439
    %473 = vmatprep.subr.mxu0 0.0
    %474 = vmatpush1.msra.mxu0 0.0
    %475 = vmatprep.subr.mxu0 0.0
    %476 = vmatpush1.msra.mxu0 0.0
    %477 = vmatprep.subr.mxu0 0.0
    %478 = vmatpush1.msra.mxu0 0.0
    %479 = vmatprep.subr.mxu0 0.0
    %480 = vmatpush1.msra.mxu0 0.0
    %481 = vmatprep.subr.mxu0 0.0
    %482 = vmatpush1.msra.mxu0 0.0
    %483 = vmatprep.subr.mxu0 0.0
    %484 = vmatpush1.msra.mxu0 0.0
    %485 = vmatprep.subr.mxu0 0.0
    %486 = vmatpush1.msra.mxu0 0.0
    %487 = vmatprep.subr.mxu0 0.0
    %488 = vmatpush1.msra.mxu0 0.0
    %489 = vmatprep.subr.mxu0 0.0
    %490 = vmatpush1.msra.mxu0 0.0
    %491 = vmatprep.subr.mxu0 0.0
    %492 = vmatpush1.msra.mxu0 0.0
    %493 = vmatprep.subr.mxu0 0.0
    %494 = vmatpush1.msra.mxu0 0.0
    %495 = vmatprep.subr.mxu0 0.0
    %496 = vmatpush1.msra.mxu0 0.0
    %497 = vmatprep.subr.mxu0 0.0
    %498 = vmatpush1.msra.mxu0 0.0
    %499 = vmatprep.subr.mxu0 0.0
    %500 = vmatpush1.msra.mxu0 0.0
    %501 = vmatprep.subr.mxu0 0.0
    %502 = vmatpush1.msra.mxu0 0.0
    %503 = vmatprep.subr.mxu0 0.0
    %504 = vmatpush1.msra.mxu0 0.0
    %505 = vmatprep.mubr.f32.mxu0 0.0
    %506 = vmatmul.mubr.f32.gmra.mrb[0].mxu0 %v408
    %v507 = vpop.f32.mrb[0].mxu0
    %v508 = vadd.f32 0.0, %v507
    %v509 = vpop.f32.mrb[0].mxu0
    %v510 = vadd.f32 0.0, %v509
    %511 = vdwg.mxu0
    %v512 = vmax.f32 %v508, 0.0
    %v513 = vmax.f32 %v510, 0.0
    %514 = vrot.lane.b32.xlu0 %v512, 127
    %v515 = vpop.permute.xlu0 %514
    %516 = vrot.lane.b32.xlu0 %v513, 127
    %v517 = vpop.permute.xlu0 %516
    %v518 = vsel %vm148, %v515, %v517
    %v519 = vsel %vm148, %v517, %v515
    %v520 = vmax.f32 %v512, %v518
    %v521 = vmax.f32 %v513, %v519
    %522 = vrot.lane.b32.xlu0 %v520, 112
    %v523 = vpop.permute.xlu0 %522
    %524 = vrot.lane.b32.xlu0 %v521, 112
    %v525 = vpop.permute.xlu0 %524
    %v526 = vsel %vm186, %v523, %v525
    %v527 = vsel %vm186, %v525, %v523
    %v528 = vmax.f32 %v520, %v526
    %v529 = vmax.f32 %v521, %v527
    %v530 = vld [vmem:[#allocation3 + $0x40] sm:$0xff]
    %v531 = vld [vmem:[#allocation3 + $0x50] sm:$0xff]
    %v532 = vld [vmem:[#allocation3 + $0x60] sm:$0xff]
    %v533 = vld [vmem:[#allocation3 + $0x70] sm:$0xff]
    %v534 = vld [vmem:[#allocation3 + $0x80] sm:$0xff]
    %v535 = vld [vmem:[#allocation3 + $0x90] sm:$0xff]
    %v536 = vld [vmem:[#allocation3 + $0xa0] sm:$0xff]
    %v537 = vld [vmem:[#allocation3 + $0xb0] sm:$0xff]
    %v538 = vld [vmem:[#allocation3 + $0xc0] sm:$0xff]
    %v539 = vld [vmem:[#allocation3 + $0xd0] sm:$0xff]
    %v540 = vld [vmem:[#allocation3 + $0xe0] sm:$0xff]
    %v541 = vld [vmem:[#allocation3 + $0xf0] sm:$0xff]
    %v542 = vld [vmem:[#allocation3 + $0x100] sm:$0xff]
    %v543 = vld [vmem:[#allocation3 + $0x110] sm:$0xff]
    %v544 = vld [vmem:[#allocation3 + $0x120] sm:$0xff]
    %v545 = vld [vmem:[#allocation3 + $0x130] sm:$0xff]
    %v546 = vld [vmem:[#allocation3 + $0x140] sm:$0xff]
    %v547 = vld [vmem:[#allocation3 + $0x150] sm:$0xff]
    %v548 = vld [vmem:[#allocation3 + $0x160] sm:$0xff]
    %v549 = vld [vmem:[#allocation3 + $0x170] sm:$0xff]
    %v550 = vld [vmem:[#allocation3 + $0x180] sm:$0xff]
    %v551 = vld [vmem:[#allocation3 + $0x190] sm:$0xff]
    %v552 = vld [vmem:[#allocation3 + $0x1a0] sm:$0xff]
    %v553 = vld [vmem:[#allocation3 + $0x1b0] sm:$0xff]
    %v554 = vld [vmem:[#allocation3 + $0x1c0] sm:$0xff]
    %v555 = vld [vmem:[#allocation3 + $0x1d0] sm:$0xff]
    %v556 = vld [vmem:[#allocation3 + $0x1e0] sm:$0xff]
    %v557 = vld [vmem:[#allocation3 + $0x1f0] sm:$0xff]
    %v558 = vld [vmem:[#allocation3 + $0x200] sm:$0xff]
    %v559 = vld [vmem:[#allocation3 + $0x210] sm:$0xff]
    %v560 = vld [vmem:[#allocation3 + $0x220] sm:$0xff]
    %v561 = vld [vmem:[#allocation3 + $0x230] sm:$0xff]
    %562 = vmatprep.subr.mxu0 0.0
    %563 = vmatpush1.msra.mxu0 %v530
    %564 = vmatprep.subr.mxu0 0.0
    %565 = vmatpush1.msra.mxu0 %v531
    %566 = vmatprep.subr.mxu0 0.0
    %567 = vmatpush1.msra.mxu0 %v532
    %568 = vmatprep.subr.mxu0 0.0
    %569 = vmatpush1.msra.mxu0 %v533
    %570 = vmatprep.subr.mxu0 0.0
    %571 = vmatpush1.msra.mxu0 %v534
    %572 = vmatprep.subr.mxu0 0.0
    %573 = vmatpush1.msra.mxu0 %v535
    %574 = vmatprep.subr.mxu0 0.0
    %575 = vmatpush1.msra.mxu0 %v536
    %576 = vmatprep.subr.mxu0 0.0
    %577 = vmatpush1.msra.mxu0 %v537
    %578 = vmatprep.subr.mxu0 0.0
    %579 = vmatpush1.msra.mxu0 %v538
    %580 = vmatprep.subr.mxu0 0.0
    %581 = vmatpush1.msra.mxu0 %v539
    %582 = vmatprep.subr.mxu0 0.0
    %583 = vmatpush1.msra.mxu0 %v540
    %584 = vmatprep.subr.mxu0 0.0
    %585 = vmatpush1.msra.mxu0 %v541
    %586 = vmatprep.subr.mxu0 0.0
    %587 = vmatpush1.msra.mxu0 %v542
    %588 = vmatprep.subr.mxu0 0.0
    %589 = vmatpush1.msra.mxu0 %v543
    %590 = vmatprep.subr.mxu0 0.0
    %591 = vmatpush1.msra.mxu0 %v544
    %592 = vmatprep.subr.mxu0 0.0
    %593 = vmatpush1.msra.mxu0 %v545
    %594 = vmatprep.subr.mxu0 0.0
    %595 = vmatpush1.msra.mxu0 %v546
    %596 = vmatprep.subr.mxu0 0.0
    %597 = vmatpush1.msra.mxu0 %v547
    %598 = vmatprep.subr.mxu0 0.0
    %599 = vmatpush1.msra.mxu0 %v548
    %600 = vmatprep.subr.mxu0 0.0
    %601 = vmatpush1.msra.mxu0 %v549
    %602 = vmatprep.subr.mxu0 0.0
    %603 = vmatpush1.msra.mxu0 %v550
    %604 = vmatprep.subr.mxu0 0.0
    %605 = vmatpush1.msra.mxu0 %v551
    %606 = vmatprep.subr.mxu0 0.0
    %607 = vmatpush1.msra.mxu0 %v552
    %608 = vmatprep.subr.mxu0 0.0
    %609 = vmatpush1.msra.mxu0 %v553
    %610 = vmatprep.subr.mxu0 0.0
    %611 = vmatpush1.msra.mxu0 %v554
    %612 = vmatprep.subr.mxu0 0.0
    %613 = vmatpush1.msra.mxu0 %v555
    %614 = vmatprep.subr.mxu0 0.0
    %615 = vmatpush1.msra.mxu0 %v556
    %616 = vmatprep.subr.mxu0 0.0
    %617 = vmatpush1.msra.mxu0 %v557
    %618 = vmatprep.subr.mxu0 0.0
    %619 = vmatpush1.msra.mxu0 %v558
    %620 = vmatprep.subr.mxu0 0.0
    %621 = vmatpush1.msra.mxu0 %v559
    %622 = vmatprep.subr.mxu0 0.0
    %623 = vmatpush1.msra.mxu0 %v560
    %624 = vmatprep.subr.mxu0 0.0
    %625 = vmatpush1.msra.mxu0 %v561
    %626 = vmatprep.mubr.f32.mxu0 %v529
    %627 = vmatmul.mubr.f32.gmra.mrb[0].mxu0 %v528
    %v628 = vpop.f32.mrb[0].mxu0
    %v629 = vadd.f32 0.0, %v628
    %v630 = vpop.f32.mrb[0].mxu0
    %631 = vdwg.mxu0
    %v632 = vld [vmem:[#allocation3 + $0x340] sm:$0xff]
    %v633 = vmul.f32 %v629, %v632
    %v634 = vld [vmem:[#allocation3 + $0x350] sm:$0x3]
    %vm635 = vcmask 64512
    %v637 = vsel %vm635, %v634, 0
    %639 = vmatprep.subr.mxu0 0.0
    %640 = vmatpush1.msra.mxu0 %v633
    %641 = vmatprep.subr.mxu0 0.0
    %642 = vmatpush1.msra.mxu0 0.0
    %643 = vmatprep.subr.mxu0 0.0
    %644 = vmatpush1.msra.mxu0 0.0
    %645 = vmatprep.subr.mxu0 0.0
    %646 = vmatpush1.msra.mxu0 0.0
    %647 = vmatprep.subr.mxu0 0.0
    %648 = vmatpush1.msra.mxu0 0.0
    %649 = vmatprep.subr.mxu0 0.0
    %650 = vmatpush1.msra.mxu0 0.0
    %651 = vmatprep.subr.mxu0 0.0
    %652 = vmatpush1.msra.mxu0 0.0
    %653 = vmatprep.subr.mxu0 0.0
    %654 = vmatpush1.msra.mxu0 0.0
    %655 = vmatprep.subr.mxu0 0.0
    %656 = vmatpush1.msra.mxu0 0.0
    %657 = vmatprep.subr.mxu0 0.0
    %658 = vmatpush1.msra.mxu0 0.0
    %659 = vmatprep.subr.mxu0 0.0
    %660 = vmatpush1.msra.mxu0 0.0
    %661 = vmatprep.subr.mxu0 0.0
    %662 = vmatpush1.msra.mxu0 0.0
    %663 = vmatprep.subr.mxu0 0.0
    %664 = vmatpush1.msra.mxu0 0.0
    %665 = vmatprep.subr.mxu0 0.0
    %666 = vmatpush1.msra.mxu0 0.0
    %667 = vmatprep.subr.mxu0 0.0
    %668 = vmatpush1.msra.mxu0 0.0
    %669 = vmatprep.subr.mxu0 0.0
    %670 = vmatpush1.msra.mxu0 0.0
    %671 = vmatprep.subr.mxu0 0.0
    %672 = vmatpush1.msra.mxu0 0.0
    %673 = vmatprep.subr.mxu0 0.0
    %674 = vmatpush1.msra.mxu0 0.0
    %675 = vmatprep.subr.mxu0 0.0
    %676 = vmatpush1.msra.mxu0 0.0
    %677 = vmatprep.subr.mxu0 0.0
    %678 = vmatpush1.msra.mxu0 0.0
    %679 = vmatprep.subr.mxu0 0.0
    %680 = vmatpush1.msra.mxu0 0.0
    %681 = vmatprep.subr.mxu0 0.0
    %682 = vmatpush1.msra.mxu0 0.0
    %683 = vmatprep.subr.mxu0 0.0
    %684 = vmatpush1.msra.mxu0 0.0
    %685 = vmatprep.subr.mxu0 0.0
    %686 = vmatpush1.msra.mxu0 0.0
    %687 = vmatprep.subr.mxu0 0.0
    %688 = vmatpush1.msra.mxu0 0.0
    %689 = vmatprep.subr.mxu0 0.0
    %690 = vmatpush1.msra.mxu0 0.0
    %691 = vmatprep.subr.mxu0 0.0
    %692 = vmatpush1.msra.mxu0 0.0
    %693 = vmatprep.subr.mxu0 0.0
    %694 = vmatpush1.msra.mxu0 0.0
    %695 = vmatprep.subr.mxu0 0.0
    %696 = vmatpush1.msra.mxu0 0.0
    %697 = vmatprep.subr.mxu0 0.0
    %698 = vmatpush1.msra.mxu0 0.0
    %699 = vmatprep.subr.mxu0 0.0
    %700 = vmatpush1.msra.mxu0 0.0
    %701 = vmatprep.subr.mxu0 0.0
    %702 = vmatpush1.msra.mxu0 0.0
    %703 = vmatprep.mubr.f32.mxu0 0.0
    %704 = vmatmul.mubr.f32.gmra.mrb[0].mxu0 %v637
    %v705 = vpop.f32.mrb[0].mxu0
    %v706 = vadd.f32 0.0, %v705
    %v707 = vpop.f32.mrb[0].mxu0
    %708 = vdwg.mxu0
    %709 = vrot.lane.b32.xlu0 %v706, 64
    %v710 = vpop.permute.xlu0 %709
    %v711 = vadd.f32 %v706, %v710
    %712 = vrot.lane.b32.xlu0 %v711, 96
    %v713 = vpop.permute.xlu0 %712
    %v714 = vadd.f32 %v711, %v713
    %v715 = vld [vmem:[#allocation3 + $0x352] ss:$0 sm:$0xff]
    %v716 = vadd.f32 %v714, %v715
    %v717 = vmax.f32 %v716, 0.0
    %v718 = vld [vmem:[#allocation3 + $0x240] sm:$0xff]
    %v719 = vld [vmem:[#allocation3 + $0x250] sm:$0xff]
    %v720 = vld [vmem:[#allocation3 + $0x260] sm:$0xff]
    %v721 = vld [vmem:[#allocation3 + $0x270] sm:$0xff]
    %v722 = vld [vmem:[#allocation3 + $0x280] sm:$0xff]
    %v723 = vld [vmem:[#allocation3 + $0x290] sm:$0xff]
    %v724 = vld [vmem:[#allocation3 + $0x2a0] sm:$0xff]
    %v725 = vld [vmem:[#allocation3 + $0x2b0] sm:$0xff]
    %v726 = vld [vmem:[#allocation3 + $0x2c0] sm:$0xff]
    %v727 = vld [vmem:[#allocation3 + $0x2d0] sm:$0xff]
    %v728 = vld [vmem:[#allocation3 + $0x2e0] sm:$0xff]
    %v729 = vld [vmem:[#allocation3 + $0x2f0] sm:$0xff]
    %v730 = vld [vmem:[#allocation3 + $0x300] sm:$0xff]
    %v731 = vld [vmem:[#allocation3 + $0x310] sm:$0xff]
    %v732 = vld [vmem:[#allocation3 + $0x320] sm:$0xff]
    %v733 = vld [vmem:[#allocation3 + $0x330] sm:$0xff]
    %v734 = vld [vmem:[#allocation3 + $0x353] ss:$0 sm:$0xff]
    %735 = vmatprep.subr.mxu0 0.0
    %736 = vmatpush1.msra.mxu0 %v718
    %737 = vmatprep.subr.mxu0 0.0
    %738 = vmatpush1.msra.mxu0 %v719
    %739 = vmatprep.subr.mxu0 0.0
    %740 = vmatpush1.msra.mxu0 %v720
    %741 = vmatprep.subr.mxu0 0.0
    %742 = vmatpush1.msra.mxu0 %v721
    %743 = vmatprep.subr.mxu0 0.0
    %744 = vmatpush1.msra.mxu0 %v722
    %745 = vmatprep.subr.mxu0 0.0
    %746 = vmatpush1.msra.mxu0 %v723
    %747 = vmatprep.subr.mxu0 0.0
    %748 = vmatpush1.msra.mxu0 %v724
    %749 = vmatprep.subr.mxu0 0.0
    %750 = vmatpush1.msra.mxu0 %v725
    %751 = vmatprep.subr.mxu0 0.0
    %752 = vmatpush1.msra.mxu0 %v726
    %753 = vmatprep.subr.mxu0 0.0
    %754 = vmatpush1.msra.mxu0 %v727
    %755 = vmatprep.subr.mxu0 0.0
    %756 = vmatpush1.msra.mxu0 %v728
    %757 = vmatprep.subr.mxu0 0.0
    %758 = vmatpush1.msra.mxu0 %v729
    %759 = vmatprep.subr.mxu0 0.0
    %760 = vmatpush1.msra.mxu0 %v730
    %761 = vmatprep.subr.mxu0 0.0
    %762 = vmatpush1.msra.mxu0 %v731
    %763 = vmatprep.subr.mxu0 0.0
    %764 = vmatpush1.msra.mxu0 %v732
    %765 = vmatprep.subr.mxu0 0.0
    %766 = vmatpush1.msra.mxu0 %v733
    %767 = vmatprep.subr.mxu0 0.0
    %768 = vmatpush1.msra.mxu0 0.0
    %769 = vmatprep.subr.mxu0 0.0
    %770 = vmatpush1.msra.mxu0 0.0
    %771 = vmatprep.subr.mxu0 0.0
    %772 = vmatpush1.msra.mxu0 0.0
    %773 = vmatprep.subr.mxu0 0.0
    %774 = vmatpush1.msra.mxu0 0.0
    %775 = vmatprep.subr.mxu0 0.0
    %776 = vmatpush1.msra.mxu0 0.0
    %777 = vmatprep.subr.mxu0 0.0
    %778 = vmatpush1.msra.mxu0 0.0
    %779 = vmatprep.subr.mxu0 0.0
    %780 = vmatpush1.msra.mxu0 0.0
    %781 = vmatprep.subr.mxu0 0.0
    %782 = vmatpush1.msra.mxu0 0.0
    %783 = vmatprep.subr.mxu0 0.0
    %784 = vmatpush1.msra.mxu0 0.0
    %785 = vmatprep.subr.mxu0 0.0
    %786 = vmatpush1.msra.mxu0 0.0
    %787 = vmatprep.subr.mxu0 0.0
    %788 = vmatpush1.msra.mxu0 0.0
    %789 = vmatprep.subr.mxu0 0.0
    %790 = vmatpush1.msra.mxu0 0.0
    %791 = vmatprep.subr.mxu0 0.0
    %792 = vmatpush1.msra.mxu0 0.0
    %793 = vmatprep.subr.mxu0 0.0
    %794 = vmatpush1.msra.mxu0 0.0
    %795 = vmatprep.subr.mxu0 0.0
    %796 = vmatpush1.msra.mxu0 0.0
    %797 = vmatprep.subr.mxu0 0.0
    %798 = vmatpush1.msra.mxu0 0.0
    %799 = vmatprep.mubr.f32.mxu0 0.0
    %800 = vmatmul.mubr.f32.gmra.mrb[0].mxu0 %v717
    %v801 = vpop.f32.mrb[0].mxu0
    %v802 = vadd.f32 %v734, %v801
    %v803 = vpop.f32.mrb[0].mxu0
    %804 = vdwg.mxu0
    %805 = vst [vmem:[#allocation6] sm:$0x3] %v802
    // Predicated region
    $region14: #{forward.1} parent=1 // pred_check
      _
    $region15: #{forward.1} parent=1 // pred_check_branch
      %807 = sbr.rel (0) target = $region17
    $region16: #{forward.1} parent=1 // pred_region
      %s809 = ssub.s32 32, 32
      %810 = vsyncadd [#allocation5], %s809
      %s812 = sshll.u32 [#allocation6], 4
      %s813 = int_to_ptr.vmem [resolvable:$true] %s812
      %815 = dma.vmem_to_hbm [thread:$0]  %s813, 32, %s2, [#allocation5]
    $region17: #{forward.1} parent=1 // pred_fallthru
      _
    // Predicated region
    $region18: #{forward.1} parent=1 // pred_check
      _
    $region19: #{forward.1} parent=1 // pred_check_branch
      %817 = sbr.rel (0) target = $region21
    $region20: #{forward.1} parent=1 // pred_region
      %818 = dma.done [#allocation5], 32
    $region21: #{forward.1} parent=1 // pred_fallthru
      _
    %819 = vsyncpa [#allocation4], 1
    %820 = vsyncpa [#allocation5], 1

</llo_original>
